<compile_context>
chip_gen: v7x
topology: tpu7x:2x2x1
jax: 0.10.0
libtpu: 0.0.40
codegen_flags: <defaults>
</compile_context>

<pallas_src>
import functools

import jax
import jax.numpy as jnp
from jax import lax
from jax.experimental import pallas as pl
from jax.experimental.pallas import tpu as pltpu


def _round_up(x, m):
    return ((x + m - 1) // m) * m


def _round_down(x, m):
    return (x // m) * m


def _sublane_granule(dtype):
    itemsize = jnp.dtype(dtype).itemsize
    if itemsize >= 4:
        return 8
    if itemsize == 2:
        return 16
    return 32


def _vmem_capacity_bytes():
    try:
        return int(pltpu.get_tpu_info().vmem_capacity_bytes)
    except Exception:
        return 64 * 1024 * 1024  # conservative (v7x-sized) fallback


def _dice_kernel(pred_ref, tgt_ref, out_ref, *, smoothing, hw, chunk, n_chunks,
                 needs_mask):
    s = pl.program_id(1)
    block_rows = chunk * n_chunks  # = S, rows of 128 lanes in this grid step

    # Per-batch accumulator block: zero on the first spatial step.
    @pl.when(s == 0)
    def _():
        out_ref[...] = jnp.zeros_like(out_ref)

    def one_chunk(j, acc):
        r0 = j * chunk
        if not isinstance(r0, int):
            r0 = pl.multiple_of(r0, chunk)

        logits = pred_ref[0, :, pl.ds(r0, chunk), :].astype(jnp.float32)  # (C, chunk, 128)
        tgt = tgt_ref[0, 0, pl.ds(r0, chunk), :].astype(jnp.int32)        # (chunk, 128)

        # Softmax over the channel axis (leading axis) -- matches
        # F.softmax(pred, dim=1).  Leading-axis reductions are cross-vreg VPU
        # ops; single divide per spatial position.
        m = jnp.max(logits, axis=0, keepdims=True)
        e = jnp.exp(logits - m)
        inv_denom = 1.0 / jnp.sum(e, axis=0, keepdims=True)
        p = e * inv_denom                                                  # (C, chunk, 128)

        # one-hot(target) as a predicate, never materialized as f32
        # (onehot**2 == onehot matches the reference's target*target).
        match = lax.broadcasted_iota(jnp.int32, logits.shape, 0) == tgt[None]
        num = jnp.where(match, 2.0 * p + smoothing, smoothing)
        den = p * p + jnp.where(match, 1.0 + smoothing, smoothing)
        # TODO(synk): pl.reciprocal(den, approx=True) would move this divide to
        # the EUP slot (helps v7x) but breaks the 1e-5 reference tolerance.
        dice = jnp.sum(num / den, axis=0)                                  # (chunk, 128)

        if needs_mask:
            # Mask wrapper padding and the out-of-bounds tail of the last block.
            row = lax.broadcasted_iota(jnp.int32, (chunk, 128), 0)
            lane = lax.broadcasted_iota(jnp.int32, (chunk, 128), 1)
            gidx = (s * block_rows + r0 + row) * 128 + lane
            dice = jnp.where(gidx < hw, dice, 0.0)

        # Fold chunk rows down to 8 rows with cross-vreg adds; accumulator stays
        # lane/sublane dense and tiny (4 KiB per batch).
        return acc + jnp.sum(dice.reshape(chunk // 8, 8, 128), axis=0)

    acc0 = jnp.zeros((8, 128), jnp.float32)
    if n_chunks == 1:
        acc = one_chunk(0, acc0)
    else:
        acc = lax.fori_loop(0, n_chunks, one_chunk, acc0)
    out_ref[0] += acc


def dice_loss(pred, target, num_classes, smoothing=1.0):
    """Pallas implementation of DiceLoss.forward for num_classes > 2."""
    B, C, H, W = pred.shape
    assert C == num_classes
    # TODO(synk): num_classes <= 2 path (dense float target, no one-hot) is not
    # implemented here; this kernel covers the one-hot (num_classes > 2) path.
    assert num_classes > 2

    HW = H * W
    num_samples = B * HW

    pred_bytes = jnp.dtype(pred.dtype).itemsize
    # Keep an already-narrow target dtype (int8/uint8) for the DMA; otherwise
    # use int32 (casting to int8 in the wrapper would cost an extra HBM pass).
    if jnp.dtype(target.dtype).itemsize == 1:
        tgt_dtype = target.dtype
    else:
        tgt_dtype = jnp.int32
    tgt_bytes = jnp.dtype(tgt_dtype).itemsize

    # Sublane granule required by the dtypes: 8 (f32/i32), 16 (bf16), 32 (8-bit).
    g = max(_sublane_granule(pred.dtype), _sublane_granule(tgt_dtype))

    R0 = -(-HW // 128)            # rows of 128 lanes needed for the real data
    R = _round_up(R0, g)          # rows actually laid out for the kernel
    pad = R * 128 - HW

    pred_flat = pred.reshape(B, C, HW)
    tgt_flat = target.reshape(B, HW).astype(tgt_dtype)
    if pad:
        # Padded positions are masked in-kernel; pad values are irrelevant.
        pred_flat = jnp.pad(pred_flat, ((0, 0), (0, 0), (0, pad)))
        tgt_flat = jnp.pad(tgt_flat, ((0, 0), (0, pad)), constant_values=-1)
    pred_r = pred_flat.reshape(B, C, R, 128)
    tgt_r = tgt_flat.reshape(B, 1, R, 128)

    # Compute-chunk rows: ~512 KiB of f32 logits per chunk keeps per-chunk
    # elementwise intermediates small regardless of C.
    chunk = _round_down(max((512 * 1024) // (C * 128 * 4), g), g)
    chunk = max(g, min(chunk, R))

    # DMA block rows: as many as the per-generation VMEM budget allows for
    # double-buffered inputs, capped at 2048 rows and at the array extent.
    vmem_cap = _vmem_capacity_bytes()
    budget = int(vmem_cap * 0.45)
    per_row_bytes = 128 * (C * pred_bytes + tgt_bytes)
    s_rows = min(2048, budget // (2 * per_row_bytes), R)
    s_rows = max(chunk, _round_down(s_rows, chunk))
    n_chunks = s_rows // chunk

    n_steps = -(-R // s_rows)                       # cdiv grid; tail block may read OOB
    needs_mask = (n_steps * s_rows * 128) != HW     # padding and/or OOB tail present

    # Raise the scoped-VMEM limit to cover double-buffered inputs + per-chunk
    # f32 temporaries + headroom (never exceed ~90% of physical VMEM).
    in_block_bytes = s_rows * per_row_bytes
    vmem_limit = 2 * in_block_bytes + 8 * C * chunk * 128 * 4 + (4 << 20)
    vmem_limit = int(min(max(vmem_limit, 32 << 20), int(0.9 * vmem_cap)))

    kernel = functools.partial(
        _dice_kernel, smoothing=float(smoothing), hw=HW,
        chunk=chunk, n_chunks=n_chunks, needs_mask=needs_mask)

    partials = pl.pallas_call(
        kernel,
        out_shape=jax.ShapeDtypeStruct((B, 8, 128), jnp.float32),
        grid_spec=pltpu.PrefetchScalarGridSpec(
            num_scalar_prefetch=0,
            grid=(B, n_steps),
            in_specs=[
                pl.BlockSpec((1, C, s_rows, 128), lambda b, s: (b, 0, s, 0)),
                pl.BlockSpec((1, 1, s_rows, 128), lambda b, s: (b, 0, s, 0)),
            ],
            out_specs=pl.BlockSpec((1, 8, 128), lambda b, s: (b, 0, 0)),
        ),
        compiler_params=pltpu.CompilerParams(
            dimension_semantics=("parallel", "arbitrary"),
            vmem_limit_bytes=vmem_limit,
        ),
    )(pred_r, tgt_r)

    return -jnp.sum(partials) / num_samples


def _dice_loss_ref(pred, target, num_classes, smoothing=1.0):
    """Pure-JAX reference mirroring the PyTorch module."""
    B, _, H, W = pred.shape
    num_samples = B * H * W
    p = jax.nn.softmax(pred.astype(jnp.float32), axis=1)
    t = jax.nn.one_hot(target, num_classes, dtype=jnp.float32)
    t = jnp.transpose(t, (0, 3, 1, 2))
    inter = p * t
    denom = p * p + t * t
    dice = (2.0 * inter + smoothing) / (denom + smoothing)
    return -jnp.sum(dice) / num_samples


if __name__ == "__main__":
    num_classes = 4
    B, H, W = 2, 16, 16

    key = jax.random.PRNGKey(0)
    k_pred, k_tgt = jax.random.split(key)
    pred = jax.random.normal(k_pred, (B, num_classes, H, W), dtype=jnp.float32)
    # int8 target exercises the narrow-target DMA path (num_classes < 128).
    target = jax.random.randint(k_tgt, (B, H, W), 0, num_classes,
                                dtype=jnp.int32).astype(jnp.int8)

    loss = dice_loss(pred, target, num_classes, smoothing=1.0)
    loss = jax.block_until_ready(loss)

    ref = _dice_loss_ref(pred, target, num_classes, smoothing=1.0)
    assert jnp.allclose(loss, ref, rtol=1e-5, atol=1e-5), (loss, ref)

    print("KERNEL_OK")
</pallas_src>

<mosaic_0001>
module attributes {stable_mosaic.version = 11 : i64} {
  func.func @_dice_kernel(%arg0: i32, %arg1: i32, %arg2: memref<1x4x32x128xf32, #tpu.memory_space<vmem>>, %arg3: memref<1x1x32x128xi8, #tpu.memory_space<vmem>>, %arg4: memref<1x8x128xf32, #tpu.memory_space<vmem>>) attributes {dimension_semantics = [#tpu.dimension_semantics<parallel>, #tpu.dimension_semantics<arbitrary>], iteration_bounds = array<i64: 2, 1>, scalar_prefetch = 0 : i64, scratch_operands = 0 : i64, tpu.core_type = #tpu.core_type<tc>, window_params = [{transform_indices = @transform_0, window_bounds = array<i64: 1, 4, 32, 128>}, {transform_indices = @transform_1, window_bounds = array<i64: 1, 1, 32, 128>}, {transform_indices = @transform_2, window_bounds = array<i64: 1, 8, 128>}]} {
    %c0_i32 = arith.constant 0 : i32
    %0 = arith.cmpi eq, %arg1, %c0_i32 : i32
    %1 = arith.extui %0 : i1 to i32
    %c0_i32_0 = arith.constant 0 : i32
    %2 = arith.cmpi ne, %1, %c0_i32_0 : i32
    scf.if %2 {
      %cst_26 = arith.constant 0.000000e+00 : f32
      %59 = vector.broadcast %cst_26 : f32 to vector<1x8x128xf32>
      %c0_27 = arith.constant 0 : index
      %c0_28 = arith.constant 0 : index
      %c0_29 = arith.constant 0 : index
      %60 = vector.load %arg4[%c0_27, %c0_28, %c0_29] : memref<1x8x128xf32, #tpu.memory_space<vmem>>, vector<1x8x128xf32>
      tpu.vector_store %arg4[%c0_27, %c0_28, %c0_29], %59 {strides = array<i32>} : memref<1x8x128xf32, #tpu.memory_space<vmem>>, vector<1x8x128xf32>,
    } else {
    }
    %cst = arith.constant 0.000000e+00 : f32
    %3 = vector.broadcast %cst : f32 to vector<8x128xf32>
    %c0 = arith.constant 0 : index
    %c0_1 = arith.constant 0 : index
    %c0_2 = arith.constant 0 : index
    %c0_3 = arith.constant 0 : index
    %4 = vector.load %arg2[%c0, %c0_1, %c0_2, %c0_3] : memref<1x4x32x128xf32, #tpu.memory_space<vmem>>, vector<1x4x32x128xf32>
    %5 = vector.shape_cast %4 : vector<1x4x32x128xf32> to vector<4x32x128xf32>
    %c0_4 = arith.constant 0 : index
    %c0_5 = arith.constant 0 : index
    %c0_6 = arith.constant 0 : index
    %c0_7 = arith.constant 0 : index
    %6 = vector.load %arg3[%c0_4, %c0_5, %c0_6, %c0_7] : memref<1x1x32x128xi8, #tpu.memory_space<vmem>>, vector<1x1x32x128xi8>
    %7 = vector.shape_cast %6 : vector<1x1x32x128xi8> to vector<32x128xi8>
    %8 = arith.extsi %7 : vector<32x128xi8> to vector<32x128xi32>
    %cst_8 = arith.constant dense<0xFF800000> : vector<32x128xf32>
    %9 = vector.multi_reduction <maximumf>, %5, %cst_8 [0] : vector<4x32x128xf32> to vector<32x128xf32>
    %10 = vector.shape_cast %9 : vector<32x128xf32> to vector<1x32x128xf32>
    %11 = vector.broadcast %10 : vector<1x32x128xf32> to vector<4x32x128xf32>
    %12 = arith.subf %5, %11 : vector<4x32x128xf32>
    %13 = math.exp %12 : vector<4x32x128xf32>
    %cst_9 = arith.constant dense<0.000000e+00> : vector<32x128xf32>
    %14 = vector.multi_reduction <add>, %13, %cst_9 [0] : vector<4x32x128xf32> to vector<32x128xf32>
    %15 = vector.shape_cast %14 : vector<32x128xf32> to vector<1x32x128xf32>
    %cst_10 = arith.constant 1.000000e+00 : f32
    %16 = vector.broadcast %cst_10 : f32 to vector<1x32x128xf32>
    %17 = arith.divf %16, %15 : vector<1x32x128xf32>
    %18 = vector.broadcast %17 : vector<1x32x128xf32> to vector<4x32x128xf32>
    %19 = arith.mulf %13, %18 : vector<4x32x128xf32>
    %20 = tpu.iota {dimensions = array<i32: 0>} : vector<4x32x128xi32>
    %21 = vector.shape_cast %8 : vector<32x128xi32> to vector<1x32x128xi32>
    %22 = vector.broadcast %21 : vector<1x32x128xi32> to vector<4x32x128xi32>
    %23 = arith.cmpi eq, %20, %22 : vector<4x32x128xi32>
    %cst_11 = arith.constant 2.000000e+00 : f32
    %24 = vector.broadcast %cst_11 : f32 to vector<4x32x128xf32>
    %25 = arith.mulf %24, %19 : vector<4x32x128xf32>
    %cst_12 = arith.constant 1.000000e+00 : f32
    %26 = vector.broadcast %cst_12 : f32 to vector<4x32x128xf32>
    %27 = arith.addf %25, %26 : vector<4x32x128xf32>
    %cst_13 = arith.constant 1.000000e+00 : f32
    %28 = vector.broadcast %cst_13 : f32 to vector<4x32x128xf32>
    %29 = arith.select %23, %27, %28 : vector<4x32x128xi1>, vector<4x32x128xf32>
    %30 = arith.mulf %19, %19 : vector<4x32x128xf32>
    %cst_14 = arith.constant 2.000000e+00 : f32
    %cst_15 = arith.constant 1.000000e+00 : f32
    %31 = vector.broadcast %cst_14 : f32 to vector<4x32x128xf32>
    %32 = vector.broadcast %cst_15 : f32 to vector<4x32x128xf32>
    %33 = arith.select %23, %31, %32 : vector<4x32x128xi1>, vector<4x32x128xf32>
    %34 = arith.addf %30, %33 : vector<4x32x128xf32>
    %35 = arith.divf %29, %34 : vector<4x32x128xf32>
    %cst_16 = arith.constant dense<0.000000e+00> : vector<32x128xf32>
    %36 = vector.multi_reduction <add>, %35, %cst_16 [0] : vector<4x32x128xf32> to vector<32x128xf32>
    %37 = tpu.iota {dimensions = array<i32: 0>} : vector<32x128xi32>
    %38 = tpu.iota {dimensions = array<i32: 1>} : vector<32x128xi32>
    %c32_i32 = arith.constant 32 : i32
    %39 = arith.muli %arg1, %c32_i32 : i32
    %c0_i32_17 = arith.constant 0 : i32
    %40 = arith.addi %39, %c0_i32_17 : i32
    %41 = vector.broadcast %40 : i32 to vector<32x128xi32>
    %42 = arith.addi %41, %37 : vector<32x128xi32>
    %c128_i32 = arith.constant 128 : i32
    %43 = vector.broadcast %c128_i32 : i32 to vector<32x128xi32>
    %44 = arith.muli %42, %43 : vector<32x128xi32>
    %45 = arith.addi %44, %38 : vector<32x128xi32>
    %c256_i32 = arith.constant 256 : i32
    %46 = vector.broadcast %c256_i32 : i32 to vector<32x128xi32>
    %47 = arith.cmpi slt, %45, %46 : vector<32x128xi32>
    %cst_18 = arith.constant 0.000000e+00 : f32
    %48 = vector.broadcast %cst_18 : f32 to vector<32x128xf32>
    %49 = arith.select %47, %36, %48 : vector<32x128xi1>, vector<32x128xf32>
    %50 = vector.shape_cast %49 : vector<32x128xf32> to vector<4x8x128xf32>
    %cst_19 = arith.constant dense<0.000000e+00> : vector<8x128xf32>
    %51 = vector.multi_reduction <add>, %50, %cst_19 [0] : vector<4x8x128xf32> to vector<8x128xf32>
    %52 = arith.addf %3, %51 : vector<8x128xf32>
    %c0_20 = arith.constant 0 : index
    %c0_21 = arith.constant 0 : index
    %c0_22 = arith.constant 0 : index
    %53 = vector.load %arg4[%c0_20, %c0_21, %c0_22] : memref<1x8x128xf32, #tpu.memory_space<vmem>>, vector<1x8x128xf32>
    %54 = vector.shape_cast %53 : vector<1x8x128xf32> to vector<8x128xf32>
    %55 = arith.addf %54, %52 : vector<8x128xf32>
    %c0_23 = arith.constant 0 : index
    %c0_24 = arith.constant 0 : index
    %c0_25 = arith.constant 0 : index
    %56 = vector.load %arg4[%c0_23, %c0_24, %c0_25] : memref<1x8x128xf32, #tpu.memory_space<vmem>>, vector<1x8x128xf32>
    %57 = vector.shape_cast %56 : vector<1x8x128xf32> to vector<8x128xf32>
    %58 = vector.shape_cast %55 : vector<8x128xf32> to vector<1x8x128xf32>
    tpu.vector_store %arg4[%c0_23, %c0_24, %c0_25], %58 {strides = array<i32>} : memref<1x8x128xf32, #tpu.memory_space<vmem>>, vector<1x8x128xf32>,
    return
  }
  func.func @transform_0(%arg0: i32, %arg1: i32) -> (i32, i32, i32, i32) {
    %c0_i32 = arith.constant 0 : i32
    %c0_i32_0 = arith.constant 0 : i32
    %c0_i32_1 = arith.constant 0 : i32
    return %arg0, %c0_i32, %arg1, %c0_i32_0 : i32, i32, i32, i32
  }
  func.func @transform_1(%arg0: i32, %arg1: i32) -> (i32, i32, i32, i32) {
    %c0_i32 = arith.constant 0 : i32
    %c0_i32_0 = arith.constant 0 : i32
    %c0_i32_1 = arith.constant 0 : i32
    return %arg0, %c0_i32, %arg1, %c0_i32_0 : i32, i32, i32, i32
  }
  func.func @transform_2(%arg0: i32, %arg1: i32) -> (i32, i32, i32) {
    %c0_i32 = arith.constant 0 : i32
    %c0_i32_0 = arith.constant 0 : i32
    %c0_i32_1 = arith.constant 0 : i32
    return %arg0, %c0_i32, %c0_i32_0 : i32, i32, i32
  }
}

</mosaic_0001>

<llo_original>
// kernel: tpu_custom_call.1
$region0: #{tpu_custom_call.1}
  #allocation0 [shape = 'u32[]', space=smem, size = 0x4, offset = 0x4, fixed_abs, tag = 'smem constant byte address 0x4 - core index']
  #allocation1 [shape = 'u32[144,128]{1,0:T(1,128)}', space=vmem, size = 0x12000, scoped, tag = 'internal scratch']
  %s0 = inlined_call_operand.hbm [shape: f32[2,4,32,128], index: 0, kind: input, shape index: {}]
  %s1 = inlined_call_operand.hbm [shape: s8[2,1,32,128], index: 1, kind: input, shape index: {}]
  %s2 = inlined_call_operand.hbm [shape: f32[2,8,128], index: 2, kind: output, shape index: {}]
  %s3 = sld [smem:[#allocation0]]
  $region53: #{tpu_custom_call.1} parent=0
    _
  %s5 = ssub.s32 1, %s3
  %s6 = scalar_select 0, %s5, %s3
  $region1: #{tpu_custom_call.1} parent=0
    #allocation2 [shape = 'u8[131072]{0}', space=vmem, size = 0x20000, scoped, tag = 'input window, operand 0']
    #allocation3 [shape = 's32[2]{0}', space=sflag, size = 0x8, scoped, tag = 'scoped memory for tpu_custom_call.1']
    #allocation4 [shape = 's32[2]{0}', space=sflag, size = 0x8, scoped, tag = 'scoped memory for tpu_custom_call.1']
    #allocation5 [shape = 'u8[8192]{0}', space=vmem, size = 0x2000, scoped, tag = 'input window, operand 1']
    #allocation6 [shape = 's32[2]{0}', space=sflag, size = 0x8, scoped, tag = 'scoped memory for tpu_custom_call.1']
    #allocation7 [shape = 'u8[8192]{0}', space=vmem, size = 0x2000, scoped, tag = 'output window, operand 0']
    %7 = vsyncpa [#allocation3], 0
    %s8 = scalar_lea.sflag [#allocation3], 1
    %9 = vsyncpa %s8, 0
    %10 = vsyncpa [#allocation6], 0
    %s11 = scalar_lea.sflag [#allocation6], 1
    %12 = vsyncpa %s11, 0
    %13 = vsyncpa [#allocation4], 0
    %s14 = scalar_lea.sflag [#allocation4], 1
    %15 = vsyncpa %s14, 0
    loop: start=0, step=1, limit=4
    $region2: #{tpu_custom_call.1} parent=1 // loop_pre_header
      _
    $region3: #{tpu_custom_call.1} parent=1 // loop_header
      %s17 = sphi 0, %s21
      %p18 = scmp.ge.s32.totalorder %s17, 4
      %s24 = sphi 0, %s36
      %s25 = sphi 0, %s32
      %s26 = sphi 0, %s24
      %s27 = sphi 0, %s25
      %s28 = sphi 0, %s26
      %s29 = sphi 0, %s27
      %s41 = sphi 0, %s43
      %s44 = sphi 0, %s41
      %s45 = sphi 0, %s44
      %s61 = sphi 0, %s45
      %s69 = sphi 0, %s71
      %s72 = sphi 0, %s69
      %s73 = sphi 0, %s72
      %s89 = sphi 0, %s73
      %s95 = sphi 0, %s97
      %s98 = sphi 0, %s95
      %s99 = sphi 0, %s98
      %s115 = sphi 0, %s99
    $region4: #{tpu_custom_call.1} parent=1 // loop_header_branch
      %20 = sbr.rel (%p18) target = $region8
    $region5: #{tpu_custom_call.1} parent=1 // loop_body
      %s22 = ssub.s32 %s17, 1
      %s23 = ssub.s32 %s17, 2
      %s30 = sadd.s32 1, %s25
      %p31 = scmp.ge.s32.totalorder %s30, 1
      %s32 = scalar_select %p31, 0, %s30
      %s33 = sadd.s32 1, %s24
      %s34 = scalar_select %p31, %s33, %s24
      %p35 = scmp.ge.s32.totalorder %s34, 2
      %s36 = scalar_select %p35, 0, %s34
      %s37 = ssub.s32 %s24, %s36
      %s38 = ssub.s32 %s25, %s32
      %s39 = sor.u32 %s37, %s38
      %p40 = scmp.eq.s32.totalorder %s39, 0
      %s42 = sadd.s32 %s41, 1
      %s43 = scalar_select %p40, %s41, %s42
      %p46 = pneg %p40
      %p47 = scmp.eq.s32.totalorder %s17, 1
      %p48 = por %p46, %p47
      %p49 = scmp.ne.s32.totalorder %s41, %s44
      %p50 = scmp.eq.s32.totalorder %s17, 0
      %p51 = por %p49, %p50
      %p52 = scmp.ne.s32.totalorder %s41, %s44
      %p53 = scmp.eq.s32.totalorder %s22, 1
      %p54 = por %p52, %p53
      %p55 = scmp.ne.s32.totalorder %s44, %s45
      %p56 = scmp.eq.s32.totalorder %s22, 0
      %p57 = por %p55, %p56
      %p58 = scmp.ne.s32.totalorder %s44, %s45
      %p59 = scmp.eq.s32.totalorder %s23, 1
      %p60 = por %p58, %p59
      %p62 = scmp.ne.s32.totalorder %s45, %s61
      %p63 = scmp.eq.s32.totalorder %s23, 0
      %p64 = por %p62, %p63
      %s65 = ssub.s32 %s24, %s36
      %s66 = ssub.s32 %s25, %s32
      %s67 = sor.u32 %s65, %s66
      %p68 = scmp.eq.s32.totalorder %s67, 0
      %s70 = sadd.s32 %s69, 1
      %s71 = scalar_select %p68, %s69, %s70
      %p74 = pneg %p68
      %p75 = scmp.eq.s32.totalorder %s17, 1
      %p76 = por %p74, %p75
      %p77 = scmp.ne.s32.totalorder %s69, %s72
      %p78 = scmp.eq.s32.totalorder %s17, 0
      %p79 = por %p77, %p78
      %p80 = scmp.ne.s32.totalorder %s69, %s72
      %p81 = scmp.eq.s32.totalorder %s22, 1
      %p82 = por %p80, %p81
      %p83 = scmp.ne.s32.totalorder %s72, %s73
      %p84 = scmp.eq.s32.totalorder %s22, 0
      %p85 = por %p83, %p84
      %p86 = scmp.ne.s32.totalorder %s72, %s73
      %p87 = scmp.eq.s32.totalorder %s23, 1
      %p88 = por %p86, %p87
      %p90 = scmp.ne.s32.totalorder %s73, %s89
      %p91 = scmp.eq.s32.totalorder %s23, 0
      %p92 = por %p90, %p91
      %s93 = ssub.s32 %s24, %s36
      %p94 = scmp.eq.s32.totalorder %s93, 0
      %s96 = sadd.s32 %s95, 1
      %s97 = scalar_select %p94, %s95, %s96
      %p100 = pneg %p94
      %p101 = scmp.eq.s32.totalorder %s17, 1
      %p102 = por %p100, %p101
      %p103 = scmp.ne.s32.totalorder %s95, %s98
      %p104 = scmp.eq.s32.totalorder %s17, 0
      %p105 = por %p103, %p104
      %p106 = scmp.ne.s32.totalorder %s95, %s98
      %p107 = scmp.eq.s32.totalorder %s22, 1
      %p108 = por %p106, %p107
      %p109 = scmp.ne.s32.totalorder %s98, %s99
      %p110 = scmp.eq.s32.totalorder %s22, 0
      %p111 = por %p109, %p110
      %p112 = scmp.ne.s32.totalorder %s98, %s99
      %p113 = scmp.eq.s32.totalorder %s23, 1
      %p114 = por %p112, %p113
      %p116 = scmp.ne.s32.totalorder %s99, %s115
      %p117 = scmp.eq.s32.totalorder %s23, 0
      %p118 = por %p116, %p117
      %p119 = scmp.le.s32.totalorder 1, %s17
      %p120 = scmp.lt.s32.totalorder %s17, 3
      %p121 = pnand %p119, %p120
      %p122 = pneg %p121
      // Predicated region
      $region9: #{tpu_custom_call.1} parent=5 // pred_check
        _
      $region10: #{tpu_custom_call.1} parent=5 // pred_check_branch
        %124 = sbr.rel (%p121) target = $region12
      $region11: #{tpu_custom_call.1} parent=5 // pred_region
        %s125 = ssub.s32 %s17, 1
      $region12: #{tpu_custom_call.1} parent=5 // pred_fallthru
        _
      %p126 = scmp.lt.s32.totalorder %s17, 2
      // Predicated region
      $region13: #{tpu_custom_call.1} parent=5 // pred_check
        %p127 = pneg %p126
      $region14: #{tpu_custom_call.1} parent=5 // pred_check_branch
        %129 = sbr.rel (%p127) target = $region16
      $region15: #{tpu_custom_call.1} parent=5 // pred_region
        // Predicated region
        $region17: #{tpu_custom_call.1} parent=15 // pred_check
          %p130 = pneg %p51
        $region18: #{tpu_custom_call.1} parent=15 // pred_check_branch
          %132 = sbr.rel (%p130) target = $region20
        $region19: #{tpu_custom_call.1} parent=15 // pred_region
          %s133 = sand.u32 %s41, 1
          %s134 = scalar_lea.sflag [#allocation3], %s133
          %s135 = sand.u32 %s41, 1
          %s136 = smul.addr %s135, 128
          %s137 = scalar_lea.vmem [#allocation2], %s136
          %s138 = smul.u32 4, %s25
          %s140 = ssub.s32 2048, 2048
          %141 = vsyncadd %s134, %s140
          %s142 = smul.addr %s24, 16
          %s143 = sadd.s32 %s138, %s142
          %s144 = smul.addr %s143, 128
          %s145 = scalar_lea.hbm %s0, %s144
          %s146 = sshll.u32 %s137, 4
          %s147 = int_to_ptr.vmem [resolvable:$true] %s146
          %152 = dma.hbm_to_vmem [thread:$0]  %s145, 2048, %s147, %s134, 128, 128, 8
        $region20: #{tpu_custom_call.1} parent=15 // pred_fallthru
          _
        // Predicated region
        $region21: #{tpu_custom_call.1} parent=15 // pred_check
          %p153 = pneg %p79
        $region22: #{tpu_custom_call.1} parent=15 // pred_check_branch
          %155 = sbr.rel (%p153) target = $region24
        $region23: #{tpu_custom_call.1} parent=15 // pred_region
          %s156 = sand.u32 %s69, 1
          %s157 = scalar_lea.sflag [#allocation6], %s156
          %s158 = sand.u32 %s69, 1
          %s159 = smul.addr %s158, 8
          %s160 = scalar_lea.vmem [#allocation5], %s159
          %s162 = ssub.s32 128, 128
          %163 = vsyncadd %s157, %s162
          %s164 = sadd.s32 %s25, %s24
          %s165 = smul.addr %s164, 128
          %s166 = scalar_lea.hbm %s1, %s165
          %s168 = sshll.u32 %s160, 4
          %s169 = int_to_ptr.vmem [resolvable:$true] %s168
          %171 = dma.hbm_to_vmem [thread:$0]  %s166, 128, %s169, %s157
        $region24: #{tpu_custom_call.1} parent=15 // pred_fallthru
          _
      $region16: #{tpu_custom_call.1} parent=5 // pred_fallthru
        _
      %p172 = scmp.le.s32.totalorder 1, %s17
      %p173 = scmp.lt.s32.totalorder %s17, 3
      %p174 = pnand %p172, %p173
      %p175 = pneg %p174
      // Predicated region
      $region25: #{tpu_custom_call.1} parent=5 // pred_check
        _
      $region26: #{tpu_custom_call.1} parent=5 // pred_check_branch
        %177 = sbr.rel (%p174) target = $region28
      $region27: #{tpu_custom_call.1} parent=5 // pred_region
        %s178 = ssub.s32 %s17, 1
        %s179 = sand.u32 %s44, 1
        %s180 = scalar_lea.sflag [#allocation3], %s179
        %s181 = sand.u32 %s44, 1
        %s182 = smul.addr %s181, 128
        %s183 = scalar_lea.vmem [#allocation2], %s182
        // Predicated region
        $region29: #{tpu_custom_call.1} parent=27 // pred_check
          %p184 = pneg %p57
        $region30: #{tpu_custom_call.1} parent=27 // pred_check_branch
          %186 = sbr.rel (%p184) target = $region32
        $region31: #{tpu_custom_call.1} parent=27 // pred_region
          %187 = dma.done %s180, 2048
        $region32: #{tpu_custom_call.1} parent=27 // pred_fallthru
          _
        %s188 = sand.u32 %s72, 1
        %s189 = scalar_lea.sflag [#allocation6], %s188
        %s190 = sand.u32 %s72, 1
        %s191 = smul.addr %s190, 8
        %s192 = scalar_lea.vmem [#allocation5], %s191
        // Predicated region
        $region33: #{tpu_custom_call.1} parent=27 // pred_check
          %p193 = pneg %p85
        $region34: #{tpu_custom_call.1} parent=27 // pred_check_branch
          %195 = sbr.rel (%p193) target = $region36
        $region35: #{tpu_custom_call.1} parent=27 // pred_region
          %196 = dma.done %s189, 128
        $region36: #{tpu_custom_call.1} parent=27 // pred_fallthru
          _
        %s197 = sand.u32 %s44, 1
        %s198 = scalar_lea.sflag [#allocation3], %s197
        %s199 = sand.u32 %s44, 1
        %s200 = smul.addr %s199, 128
        %s201 = scalar_lea.vmem [#allocation2], %s200
        %p202 = pneg %p57
        %p203 = pneg %p54
        %s204 = sand.u32 %s72, 1
        %s205 = scalar_lea.sflag [#allocation6], %s204
        %s206 = sand.u32 %s72, 1
        %s207 = smul.addr %s206, 8
        %s208 = scalar_lea.vmem [#allocation5], %s207
        %p209 = pneg %p85
        %p210 = pneg %p82
        %p211 = pneg %p111
        %p212 = pneg %p108
        %s213 = sand.u32 %s98, 1
        %s214 = scalar_lea.sflag [#allocation4], %s213
        %s215 = sand.u32 %s98, 1
        %s216 = smul.addr %s215, 8
        %s217 = scalar_lea.vmem [#allocation7], %s216
        %s218 = smul.u32 4, %s27
        %p219 = scmp.eq.s32.totalorder %s27, 0
        // Predicated region
        $region37: #{tpu_custom_call.1} parent=27 // pred_check
          %p220 = pneg %p219
        $region38: #{tpu_custom_call.1} parent=27 // pred_check_branch
          %222 = sbr.rel (%p220) target = $region40
        $region39: #{tpu_custom_call.1} parent=27 // pred_region
          %223 = vst [vmem:[%s217] sm:$0xff] 0.0
        $region40: #{tpu_custom_call.1} parent=27 // pred_fallthru
          _
        %v224 = vld [vmem:[%s183] sm:$0xff]
        %v225 = vld [vmem:[%s183 + $0x8] sm:$0xff]
        %v226 = vld [vmem:[%s183 + $0x10] sm:$0xff]
        %v227 = vld [vmem:[%s183 + $0x18] sm:$0xff]
        %v228 = vld [vmem:[%s183 + $0x20] sm:$0xff]
        %v229 = vld [vmem:[%s183 + $0x28] sm:$0xff]
        %v230 = vld [vmem:[%s183 + $0x30] sm:$0xff]
        %v231 = vld [vmem:[%s183 + $0x38] sm:$0xff]
        %v232 = vld [vmem:[%s183 + $0x40] sm:$0xff]
        %v233 = vld [vmem:[%s183 + $0x48] sm:$0xff]
        %v234 = vld [vmem:[%s183 + $0x50] sm:$0xff]
        %v235 = vld [vmem:[%s183 + $0x58] sm:$0xff]
        %v236 = vld [vmem:[%s183 + $0x60] sm:$0xff]
        %v237 = vld [vmem:[%s183 + $0x68] sm:$0xff]
        %v238 = vld [vmem:[%s183 + $0x70] sm:$0xff]
        %v239 = vld [vmem:[%s183 + $0x78] sm:$0xff]
        %v240 = vld [vmem:[%s192] sm:$0xff]
        %v241 = vunpack.c.0.s8 %v240
        %v242 = vunpack.c.1.s8 %v240
        %v243 = vunpack.c.2.s8 %v240
        %v244 = vunpack.c.3.s8 %v240
        %v245 = vmax.f32 %v224, %v228
        %v246 = vmax.f32 %v245, %v232
        %v247 = vmax.f32 %v246, %v236
        %v248 = vmax.f32 %v225, %v229
        %v249 = vmax.f32 %v248, %v233
        %v250 = vmax.f32 %v249, %v237
        %v251 = vmax.f32 %v226, %v230
        %v252 = vmax.f32 %v251, %v234
        %v253 = vmax.f32 %v252, %v238
        %v254 = vmax.f32 %v227, %v231
        %v255 = vmax.f32 %v254, %v235
        %v256 = vmax.f32 %v255, %v239
        %v257 = vsub.f32 %v224, %v247
        %v258 = vsub.f32 %v225, %v250
        %v259 = vsub.f32 %v226, %v253
        %v260 = vsub.f32 %v227, %v256
        %v261 = vsub.f32 %v228, %v247
        %v262 = vsub.f32 %v229, %v250
        %v263 = vsub.f32 %v230, %v253
        %v264 = vsub.f32 %v231, %v256
        %v265 = vsub.f32 %v232, %v247
        %v266 = vsub.f32 %v233, %v250
        %v267 = vsub.f32 %v234, %v253
        %v268 = vsub.f32 %v235, %v256
        %v269 = vsub.f32 %v236, %v247
        %v270 = vsub.f32 %v237, %v250
        %v271 = vsub.f32 %v238, %v253
        %v272 = vsub.f32 %v239, %v256
        %v273 = vmul.f32 %v257, 1.442695
        %v274 = vpow.pop %v273
        %v275 = vmul.f32 %v258, 1.442695
        %v276 = vpow.pop %v275
        %v277 = vmul.f32 %v259, 1.442695
        %v278 = vpow.pop %v277
        %v279 = vmul.f32 %v260, 1.442695
        %v280 = vpow.pop %v279
        %v281 = vmul.f32 %v261, 1.442695
        %v282 = vpow.pop %v281
        %v283 = vmul.f32 %v262, 1.442695
        %v284 = vpow.pop %v283
        %v285 = vmul.f32 %v263, 1.442695
        %v286 = vpow.pop %v285
        %v287 = vmul.f32 %v264, 1.442695
        %v288 = vpow.pop %v287
        %v289 = vmul.f32 %v265, 1.442695
        %v290 = vpow.pop %v289
        %v291 = vmul.f32 %v266, 1.442695
        %v292 = vpow.pop %v291
        %v293 = vmul.f32 %v267, 1.442695
        %v294 = vpow.pop %v293
        %v295 = vmul.f32 %v268, 1.442695
        %v296 = vpow.pop %v295
        %v297 = vmul.f32 %v269, 1.442695
        %v298 = vpow.pop %v297
        %v299 = vmul.f32 %v270, 1.442695
        %v300 = vpow.pop %v299
        %v301 = vmul.f32 %v271, 1.442695
        %v302 = vpow.pop %v301
        %v303 = vmul.f32 %v272, 1.442695
        %v304 = vpow.pop %v303
        %v305 = vadd.f32 %v274, %v282
        %v306 = vadd.f32 %v305, %v290
        %v307 = vadd.f32 %v306, %v298
        %v308 = vadd.f32 %v276, %v284
        %v309 = vadd.f32 %v308, %v292
        %v310 = vadd.f32 %v309, %v300
        %v311 = vadd.f32 %v278, %v286
        %v312 = vadd.f32 %v311, %v294
        %v313 = vadd.f32 %v312, %v302
        %v314 = vadd.f32 %v280, %v288
        %v315 = vadd.f32 %v314, %v296
        %v316 = vadd.f32 %v315, %v304
        %v317 = vrcp.pop %v307
        %v318 = vmul.f32 1.0, %v317
        %v319 = vrcp.pop %v310
        %v320 = vmul.f32 1.0, %v319
        %v321 = vrcp.pop %v313
        %v322 = vmul.f32 1.0, %v321
        %v323 = vrcp.pop %v316
        %v324 = vmul.f32 1.0, %v323
        %v325 = vmul.f32 %v274, %v318
        %v326 = vmul.f32 %v276, %v320
        %v327 = vmul.f32 %v278, %v322
        %v328 = vmul.f32 %v280, %v324
        %v329 = vmul.f32 %v282, %v318
        %v330 = vmul.f32 %v284, %v320
        %v331 = vmul.f32 %v286, %v322
        %v332 = vmul.f32 %v288, %v324
        %v333 = vmul.f32 %v290, %v318
        %v334 = vmul.f32 %v292, %v320
        %v335 = vmul.f32 %v294, %v322
        %v336 = vmul.f32 %v296, %v324
        %v337 = vmul.f32 %v298, %v318
        %v338 = vmul.f32 %v300, %v320
        %v339 = vmul.f32 %v302, %v322
        %v340 = vmul.f32 %v304, %v324
        %vm341 = vcmp.eq.s32.totalorder %v241, 0
        %vm342 = vcmp.eq.s32.totalorder %v242, 0
        %vm343 = vcmp.eq.s32.totalorder %v243, 0
        %vm344 = vcmp.eq.s32.totalorder %v244, 0
        %vm345 = vcmp.eq.s32.totalorder %v241, 1
        %vm346 = vcmp.eq.s32.totalorder %v242, 1
        %vm347 = vcmp.eq.s32.totalorder %v243, 1
        %vm348 = vcmp.eq.s32.totalorder %v244, 1
        %vm349 = vcmp.eq.s32.totalorder %v241, 2
        %vm350 = vcmp.eq.s32.totalorder %v242, 2
        %vm351 = vcmp.eq.s32.totalorder %v243, 2
        %vm352 = vcmp.eq.s32.totalorder %v244, 2
        %vm353 = vcmp.eq.s32.totalorder %v241, 3
        %vm354 = vcmp.eq.s32.totalorder %v242, 3
        %vm355 = vcmp.eq.s32.totalorder %v243, 3
        %vm356 = vcmp.eq.s32.totalorder %v244, 3
        %v357 = vmul.f32 %v325, 2.0
        %v358 = vmul.f32 %v326, 2.0
        %v359 = vmul.f32 %v327, 2.0
        %v360 = vmul.f32 %v328, 2.0
        %v361 = vmul.f32 %v329, 2.0
        %v362 = vmul.f32 %v330, 2.0
        %v363 = vmul.f32 %v331, 2.0
        %v364 = vmul.f32 %v332, 2.0
        %v365 = vmul.f32 %v333, 2.0
        %v366 = vmul.f32 %v334, 2.0
        %v367 = vmul.f32 %v335, 2.0
        %v368 = vmul.f32 %v336, 2.0
        %v369 = vmul.f32 %v337, 2.0
        %v370 = vmul.f32 %v338, 2.0
        %v371 = vmul.f32 %v339, 2.0
        %v372 = vmul.f32 %v340, 2.0
        %v373 = vadd.f32 %v357, 1.0
        %v374 = vadd.f32 %v358, 1.0
        %v375 = vadd.f32 %v359, 1.0
        %v376 = vadd.f32 %v360, 1.0
        %v377 = vadd.f32 %v361, 1.0
        %v378 = vadd.f32 %v362, 1.0
        %v379 = vadd.f32 %v363, 1.0
        %v380 = vadd.f32 %v364, 1.0
        %v381 = vadd.f32 %v365, 1.0
        %v382 = vadd.f32 %v366, 1.0
        %v383 = vadd.f32 %v367, 1.0
        %v384 = vadd.f32 %v368, 1.0
        %v385 = vadd.f32 %v369, 1.0
        %v386 = vadd.f32 %v370, 1.0
        %v387 = vadd.f32 %v371, 1.0
        %v388 = vadd.f32 %v372, 1.0
        %v389 = vsel %vm341, %v373, 1.0
        %v390 = vsel %vm342, %v374, 1.0
        %v391 = vsel %vm343, %v375, 1.0
        %v392 = vsel %vm344, %v376, 1.0
        %v393 = vsel %vm345, %v377, 1.0
        %v394 = vsel %vm346, %v378, 1.0
        %v395 = vsel %vm347, %v379, 1.0
        %v396 = vsel %vm348, %v380, 1.0
        %v397 = vsel %vm349, %v381, 1.0
        %v398 = vsel %vm350, %v382, 1.0
        %v399 = vsel %vm351, %v383, 1.0
        %v400 = vsel %vm352, %v384, 1.0
        %v401 = vsel %vm353, %v385, 1.0
        %v402 = vsel %vm354, %v386, 1.0
        %v403 = vsel %vm355, %v387, 1.0
        %v404 = vsel %vm356, %v388, 1.0
        %v405 = vmul.f32 %v325, %v325
        %v406 = vmul.f32 %v326, %v326
        %v407 = vmul.f32 %v327, %v327
        %v408 = vmul.f32 %v328, %v328
        %v409 = vmul.f32 %v329, %v329
        %v410 = vmul.f32 %v330, %v330
        %v411 = vmul.f32 %v331, %v331
        %v412 = vmul.f32 %v332, %v332
        %v413 = vmul.f32 %v333, %v333
        %v414 = vmul.f32 %v334, %v334
        %v415 = vmul.f32 %v335, %v335
        %v416 = vmul.f32 %v336, %v336
        %v417 = vmul.f32 %v337, %v337
        %v418 = vmul.f32 %v338, %v338
        %v419 = vmul.f32 %v339, %v339
        %v420 = vmul.f32 %v340, %v340
        %v421 = vsel %vm341, 2.0, 1.0
        %v422 = vsel %vm342, 2.0, 1.0
        %v423 = vsel %vm343, 2.0, 1.0
        %v424 = vsel %vm344, 2.0, 1.0
        %v425 = vsel %vm345, 2.0, 1.0
        %v426 = vsel %vm346, 2.0, 1.0
        %v427 = vsel %vm347, 2.0, 1.0
        %v428 = vsel %vm348, 2.0, 1.0
        %v429 = vsel %vm349, 2.0, 1.0
        %v430 = vsel %vm350, 2.0, 1.0
        %v431 = vsel %vm351, 2.0, 1.0
        %v432 = vsel %vm352, 2.0, 1.0
        %v433 = vsel %vm353, 2.0, 1.0
        %v434 = vsel %vm354, 2.0, 1.0
        %v435 = vsel %vm355, 2.0, 1.0
        %v436 = vsel %vm356, 2.0, 1.0
        %v437 = vadd.f32 %v405, %v421
        %v438 = vadd.f32 %v406, %v422
        %v439 = vadd.f32 %v407, %v423
        %v440 = vadd.f32 %v408, %v424
        %v441 = vadd.f32 %v409, %v425
        %v442 = vadd.f32 %v410, %v426
        %v443 = vadd.f32 %v411, %v427
        %v444 = vadd.f32 %v412, %v428
        %v445 = vadd.f32 %v413, %v429
        %v446 = vadd.f32 %v414, %v430
        %v447 = vadd.f32 %v415, %v431
        %v448 = vadd.f32 %v416, %v432
        %v449 = vadd.f32 %v417, %v433
        %v450 = vadd.f32 %v418, %v434
        %v451 = vadd.f32 %v419, %v435
        %v452 = vadd.f32 %v420, %v436
        %v453 = vrcp.pop %v437
        %v454 = vmul.f32 %v389, %v453
        %v455 = vrcp.pop %v438
        %v456 = vmul.f32 %v390, %v455
        %v457 = vrcp.pop %v439
        %v458 = vmul.f32 %v391, %v457
        %v459 = vrcp.pop %v440
        %v460 = vmul.f32 %v392, %v459
        %v461 = vrcp.pop %v441
        %v462 = vmul.f32 %v393, %v461
        %v463 = vrcp.pop %v442
        %v464 = vmul.f32 %v394, %v463
        %v465 = vrcp.pop %v443
        %v466 = vmul.f32 %v395, %v465
        %v467 = vrcp.pop %v444
        %v468 = vmul.f32 %v396, %v467
        %v469 = vrcp.pop %v445
        %v470 = vmul.f32 %v397, %v469
        %v471 = vrcp.pop %v446
        %v472 = vmul.f32 %v398, %v471
        %v473 = vrcp.pop %v447
        %v474 = vmul.f32 %v399, %v473
        %v475 = vrcp.pop %v448
        %v476 = vmul.f32 %v400, %v475
        %v477 = vrcp.pop %v449
        %v478 = vmul.f32 %v401, %v477
        %v479 = vrcp.pop %v450
        %v480 = vmul.f32 %v402, %v479
        %v481 = vrcp.pop %v451
        %v482 = vmul.f32 %v403, %v481
        %v483 = vrcp.pop %v452
        %v484 = vmul.f32 %v404, %v483
        %v485 = vadd.f32 %v454, %v462
        %v486 = vadd.f32 %v485, %v470
        %v487 = vadd.f32 %v486, %v478
        %v488 = vadd.f32 %v456, %v464
        %v489 = vadd.f32 %v488, %v472
        %v490 = vadd.f32 %v489, %v480
        %v491 = vadd.f32 %v458, %v466
        %v492 = vadd.f32 %v491, %v474
        %v493 = vadd.f32 %v492, %v482
        %v494 = vadd.f32 %v460, %v468
        %v495 = vadd.f32 %v494, %v476
        %v496 = vadd.f32 %v495, %v484
        %v497 = vlaneseq
        %v498 = vshrl.u32 %v497, 7
        %v499 = vadd.s32 %v498, 8
        %v500 = vadd.s32 %v498, 16
        %v501 = vadd.s32 %v498, 24
        %v502 = vlaneseq
        %v503 = vand.u32 %v502, 127
        %s504 = smul.u32 %s27, 32
        %v505 = vstv %s504
        %v506 = vadd.s32 %v505, %v498
        %v507 = vadd.s32 %v505, %v499
        %v508 = vadd.s32 %v505, %v500
        %v509 = vadd.s32 %v505, %v501
        %v510 = vmul.u32 %v506, 128
        %v511 = vmul.u32 %v507, 128
        %v512 = vmul.u32 %v508, 128
        %v513 = vmul.u32 %v509, 128
        %v514 = vadd.s32 %v510, %v503
        %v515 = vadd.s32 %v511, %v503
        %v516 = vadd.s32 %v512, %v503
        %v517 = vadd.s32 %v513, %v503
        %vm518 = vcmp.lt.s32.totalorder %v514, 256
        %vm519 = vcmp.lt.s32.totalorder %v515, 256
        %vm520 = vcmp.lt.s32.totalorder %v516, 256
        %vm521 = vcmp.lt.s32.totalorder %v517, 256
        %v522 = vsel %vm518, %v487, 0.0
        %v523 = vsel %vm519, %v490, 0.0
        %v524 = vsel %vm520, %v493, 0.0
        %v525 = vsel %vm521, %v496, 0.0
        %v526 = vadd.f32 %v522, %v523
        %v527 = vadd.f32 %v526, %v524
        %v528 = vadd.f32 %v527, %v525
        %v529 = vadd.f32 %v528, 0.0
        %v530 = vld [vmem:[%s217] sm:$0xff]
        %v531 = vadd.f32 %v530, %v529
        %532 = vst [vmem:[%s217] sm:$0xff] %v531
        %s533 = sand.u32 %s98, 1
        %s534 = scalar_lea.sflag [#allocation4], %s533
        %s535 = sand.u32 %s98, 1
        %s536 = smul.addr %s535, 8
        %s537 = scalar_lea.vmem [#allocation7], %s536
        // Predicated region
        $region41: #{tpu_custom_call.1} parent=27 // pred_check
          %p538 = pneg %p108
        $region42: #{tpu_custom_call.1} parent=27 // pred_check_branch
          %540 = sbr.rel (%p538) target = $region44
        $region43: #{tpu_custom_call.1} parent=27 // pred_region
          %s542 = ssub.s32 128, 128
          %543 = vsyncadd %s534, %s542
          %s544 = smul.addr %s26, 128
          %s545 = scalar_lea.hbm %s2, %s544
          %s547 = sshll.u32 %s537, 4
          %s548 = int_to_ptr.vmem [resolvable:$true] %s547
          %550 = dma.vmem_to_hbm [thread:$0]  %s548, 128, %s545, %s534
        $region44: #{tpu_custom_call.1} parent=27 // pred_fallthru
          _
      $region28: #{tpu_custom_call.1} parent=5 // pred_fallthru
        _
      %p551 = scmp.le.s32.totalorder 2, %s17
      // Predicated region
      $region45: #{tpu_custom_call.1} parent=5 // pred_check
        %p552 = pneg %p551
      $region46: #{tpu_custom_call.1} parent=5 // pred_check_branch
        %554 = sbr.rel (%p552) target = $region48
      $region47: #{tpu_custom_call.1} parent=5 // pred_region
        %s555 = ssub.s32 %s17, 2
        // Predicated region
        $region49: #{tpu_custom_call.1} parent=47 // pred_check
          %p556 = pneg %p114
        $region50: #{tpu_custom_call.1} parent=47 // pred_check_branch
          %558 = sbr.rel (%p556) target = $region52
        $region51: #{tpu_custom_call.1} parent=47 // pred_region
          %s559 = sand.u32 %s99, 1
          %s560 = scalar_lea.sflag [#allocation4], %s559
          %s561 = sand.u32 %s99, 1
          %s562 = smul.addr %s561, 8
          %s563 = scalar_lea.vmem [#allocation7], %s562
          %564 = dma.done %s560, 128
        $region52: #{tpu_custom_call.1} parent=47 // pred_fallthru
          _
      $region48: #{tpu_custom_call.1} parent=5 // pred_fallthru
        _
    $region6: #{tpu_custom_call.1} parent=1 // loop_footer
      %s21 = sadd.s32 1, %s17
    $region7: #{tpu_custom_call.1} parent=1 // loop_footer_branch
      %16 = sbr.rel target = $region3
    $region8: #{tpu_custom_call.1} parent=1 // loop_exit
      _
    %565 = vsyncpa [#allocation3], 1
    %s566 = scalar_lea.sflag [#allocation3], 1
    %567 = vsyncpa %s566, 1
    %568 = vsyncpa [#allocation6], 1
    %s569 = scalar_lea.sflag [#allocation6], 1
    %570 = vsyncpa %s569, 1
    %571 = vsyncpa [#allocation4], 1
    %s572 = scalar_lea.sflag [#allocation4], 1
    %573 = vsyncpa %s572, 1

</llo_original>
